<compile_context>
chip_gen: v5e
topology: v5e:2x2
jax: 0.10.0
libtpu: 0.0.40
codegen_flags: <defaults>
</compile_context>

<pallas_src>
import functools

import jax
import jax.numpy as jnp
import numpy as np
from jax.experimental import pallas as pl
from jax.experimental.pallas import tpu as pltpu

EPS = 1e-5   # nn.BatchNorm2d default eps
LANE = 128   # TPU lane width


def _round_up(x, m):
    return (x + m - 1) // m * m


# ----------------------------- Pallas kernels ------------------------------ #

def _conv_partial_kernel(p_ref, w_ref, y_ref, psum_ref, psq_ref):
    # p_ref: (tm, Kp) im2col patch tile; w_ref: (Kp, Cp) weights (resident).
    acc = jnp.dot(p_ref[...], w_ref[...], preferred_element_type=jnp.float32)  # (tm, Cp) f32
    y_ref[...] = acc
    # one-pass BN partial statistics for this tile (global reduction finishes in pass 2)
    psum_ref[0] = jnp.sum(acc, axis=0, keepdims=True)
    psq_ref[0] = jnp.sum(acc * acc, axis=0, keepdims=True)


def _bn_finalize_kernel(psum_ref, psq_ref, g_ref, b_ref, scale_ref, shift_ref, *, inv_count):
    # psum/psq: (nt, 1, Cp) per-tile partials; gamma/beta: (1, Cp)
    s = jnp.sum(psum_ref[...], axis=0)           # (1, Cp)
    q = jnp.sum(psq_ref[...], axis=0)            # (1, Cp)
    mean = s * inv_count
    var = q * inv_count - mean * mean            # biased variance (PyTorch train-mode normalize)
    inv_std = jax.lax.rsqrt(var + EPS)
    scale = g_ref[...] * inv_std
    scale_ref[...] = scale
    shift_ref[...] = b_ref[...] - mean * scale


def _bn_relu_kernel(y_ref, scale_ref, shift_ref, o_ref):
    # y_ref: (tm, Cp); scale/shift: (1, Cp)
    o_ref[...] = jnp.maximum(y_ref[...] * scale_ref[...] + shift_ref[...], 0.0)


def _maxpool_kernel(y_ref, o_ref):
    # y_ref: (Hp+1, 2, 2, Wp+1, C) parity-split padded activations of one image:
    #   axis1 = row parity, axis2 = col parity; padded row r=2a+b, padded col s=2c+d.
    # Pool window for output (hp, wp) = padded rows {2hp, 2hp+1, 2hp+2} x cols {2wp, 2wp+1, 2wp+2}.
    he = y_ref[:, 0]                                   # even-parity rows (Hp+1, 2, Wp+1, C)
    hodd = y_ref[:, 1]                                 # odd-parity rows
    rpair = jnp.maximum(he, hodd)                      # max over rows {2a, 2a+1}
    rowmax = jnp.maximum(rpair[:-1], he[1:])           # + row 2hp+2          -> (Hp, 2, Wp+1, C)
    we = rowmax[:, 0]                                  # even-parity cols     -> (Hp, Wp+1, C)
    wodd = rowmax[:, 1]
    cpair = jnp.maximum(we, wodd)                      # max over cols {2c, 2c+1}
    o_ref[...] = jnp.maximum(cpair[:, :-1], we[:, 1:]) # + col 2wp+2          -> (Hp, Wp, C)


# ------------------------------ wrapper (glue) ------------------------------ #

def first_conv_forward(x_nchw, w_oihw, gamma, beta, *, stride=1, tm=256):
    N, Cin, H, W = x_nchw.shape
    Cout, _, KH, KW = w_oihw.shape
    pad = 3
    Ho = (H + 2 * pad - KH) // stride + 1
    Wo = (W + 2 * pad - KW) // stride + 1
    M = N * Ho * Wo
    K = KH * KW * Cin

    Cp = _round_up(Cout, LANE)      # lane-dense output channels (unmasked vst, full MXU columns)
    Kp = _round_up(K, LANE)         # aligned contraction dimension
    Mp = _round_up(M, tm)
    nt = Mp // tm

    # ---- glue: im2col (pure data rearrangement) ----
    # TODO(synk): eliminate this HBM im2col materialization (~KH*KW x input read traffic) by
    # streaming the padded NHWC input with overlapping-window manual DMA; kept as XLA glue here.
    x = jnp.transpose(x_nchw, (0, 2, 3, 1)).astype(jnp.float32)            # NHWC
    xp = jnp.pad(x, ((0, 0), (pad, pad), (pad, pad), (0, 0)))
    taps = []
    for kh in range(KH):
        for kw in range(KW):
            taps.append(xp[:, kh:kh + stride * Ho:stride, kw:kw + stride * Wo:stride, :])
    patches = jnp.concatenate(taps, axis=-1).reshape(M, K)
    patches = jnp.pad(patches, ((0, Mp - M), (0, Kp - K)))                 # (Mp, Kp)

    # NOTE: operands kept in f32 (not bf16) to stay comfortably within the 2e-3 tolerance;
    # accumulation / BN statistics are f32 regardless.
    w2 = jnp.transpose(w_oihw, (2, 3, 1, 0)).reshape(K, Cout).astype(jnp.float32)
    w2 = jnp.pad(w2, ((0, Kp - K), (0, Cp - Cout)))                        # (Kp, Cp)
    g2 = jnp.pad(gamma.astype(jnp.float32).reshape(1, Cout), ((0, 0), (0, Cp - Cout)))
    b2 = jnp.pad(beta.astype(jnp.float32).reshape(1, Cout), ((0, 0), (0, Cp - Cout)))

    cparams = pltpu.CompilerParams(
        dimension_semantics=("parallel",),
        vmem_limit_bytes=32 * 1024 * 1024,
    )

    # ---- pass 1: tiled conv matmul + per-tile BN partial sums ----
    y_conv, psum, psq = pl.pallas_call(
        _conv_partial_kernel,
        grid=(nt,),
        in_specs=[
            pl.BlockSpec((tm, Kp), lambda i: (i, 0)),
            pl.BlockSpec((Kp, Cp), lambda i: (0, 0)),
        ],
        out_specs=(
            pl.BlockSpec((tm, Cp), lambda i: (i, 0)),
            pl.BlockSpec((1, 1, Cp), lambda i: (i, 0, 0)),
            pl.BlockSpec((1, 1, Cp), lambda i: (i, 0, 0)),
        ),
        out_shape=(
            jax.ShapeDtypeStruct((Mp, Cp), jnp.float32),
            jax.ShapeDtypeStruct((nt, 1, Cp), jnp.float32),
            jax.ShapeDtypeStruct((nt, 1, Cp), jnp.float32),
        ),
        compiler_params=cparams,
    )(patches, w2)

    # ---- pass 2: finalize global BN statistics -> per-channel scale / shift ----
    # (padded M rows are zero and contribute 0 to both partial sums; divide by the true M)
    scale, shift = pl.pallas_call(
        functools.partial(_bn_finalize_kernel, inv_count=1.0 / M),
        in_specs=[pl.BlockSpec(memory_space=pltpu.MemorySpace.VMEM)] * 4,
        out_specs=(
            pl.BlockSpec(memory_space=pltpu.MemorySpace.VMEM),
            pl.BlockSpec(memory_space=pltpu.MemorySpace.VMEM),
        ),
        out_shape=(
            jax.ShapeDtypeStruct((1, Cp), jnp.float32),
            jax.ShapeDtypeStruct((1, Cp), jnp.float32),
        ),
    )(psum, psq, g2, b2)

    # ---- pass 3: tiled normalize + ReLU ----
    y_act = pl.pallas_call(
        _bn_relu_kernel,
        grid=(nt,),
        in_specs=[
            pl.BlockSpec((tm, Cp), lambda i: (i, 0)),
            pl.BlockSpec((1, Cp), lambda i: (0, 0)),
            pl.BlockSpec((1, Cp), lambda i: (0, 0)),
        ],
        out_specs=pl.BlockSpec((tm, Cp), lambda i: (i, 0)),
        out_shape=jax.ShapeDtypeStruct((Mp, Cp), jnp.float32),
        compiler_params=cparams,
    )(y_conv, scale, shift)

    # ---- glue: even/odd parity rearrangement for the 3x3/s2/p1 max pool ----
    # zero padding == -inf padding here because the pooled input is post-ReLU (>= 0)
    Hp = (Ho + 2 - 3) // 2 + 1
    Wp = (Wo + 2 - 3) // 2 + 1
    y4 = y_act[:M].reshape(N, Ho, Wo, Cp)
    ypad = jnp.pad(y4, ((0, 0), (1, 2 * Hp + 1 - Ho), (1, 2 * Wp + 1 - Wo), (0, 0)))
    # (N, 2Hp+2, 2Wp+2, C) -> (N, Hp+1, rpar, Wp+1, cpar, C) -> (N*(Hp+1), rpar, cpar, Wp+1, C)
    y5 = (ypad.reshape(N, Hp + 1, 2, Wp + 1, 2, Cp)
              .transpose(0, 1, 2, 4, 3, 5)
              .reshape(N * (Hp + 1), 2, 2, Wp + 1, Cp))

    pooled = pl.pallas_call(
        _maxpool_kernel,
        grid=(N,),
        in_specs=[pl.BlockSpec((Hp + 1, 2, 2, Wp + 1, Cp), lambda n: (n, 0, 0, 0, 0))],
        out_specs=pl.BlockSpec((Hp, Wp, Cp), lambda n: (n, 0, 0)),
        out_shape=jax.ShapeDtypeStruct((N * Hp, Wp, Cp), jnp.float32),
        compiler_params=cparams,
    )(y5)

    out = pooled.reshape(N, Hp, Wp, Cp)[..., :Cout]
    return jnp.transpose(out, (0, 3, 1, 2))                                # back to NCHW


# ------------------------------ pure-JAX reference -------------------------- #

def reference(x, w, gamma, beta, stride=1):
    conv = jax.lax.conv_general_dilated(
        x, w, window_strides=(stride, stride), padding=((3, 3), (3, 3)),
        dimension_numbers=("NCHW", "OIHW", "NCHW"))
    mean = jnp.mean(conv, axis=(0, 2, 3), keepdims=True)
    var = jnp.mean((conv - mean) ** 2, axis=(0, 2, 3), keepdims=True)
    y = (conv - mean) * jax.lax.rsqrt(var + EPS) \
        * gamma[None, :, None, None] + beta[None, :, None, None]
    y = jnp.maximum(y, 0.0)
    return jax.lax.reduce_window(
        y, -jnp.inf, jax.lax.max,
        window_dimensions=(1, 1, 3, 3), window_strides=(1, 1, 2, 2),
        padding=((0, 0), (0, 0), (1, 1), (1, 1)))


if __name__ == "__main__":
    key = jax.random.PRNGKey(0)
    kx, kw, kg, kb = jax.random.split(key, 4)
    N, Cin, Cout, H, W = 2, 4, 8, 16, 16

    x = jax.random.normal(kx, (N, Cin, H, W), jnp.float32)
    w = 0.1 * jax.random.normal(kw, (Cout, Cin, 7, 7), jnp.float32)   # conv1.weight (no bias)
    gamma = 1.0 + 0.1 * jax.random.normal(kg, (Cout,), jnp.float32)   # norm1.weight
    beta = 0.1 * jax.random.normal(kb, (Cout,), jnp.float32)          # norm1.bias

    out = first_conv_forward(x, w, gamma, beta, stride=1)
    out = jax.block_until_ready(out)

    ref = reference(x, w, gamma, beta, stride=1)
    assert out.shape == ref.shape == (N, Cout, 8, 8), out.shape
    if not np.allclose(np.asarray(out), np.asarray(ref), rtol=2e-3, atol=2e-3):
        raise AssertionError("Pallas kernel output mismatch vs reference")
    print("KERNEL_OK")
</pallas_src>

<mosaic_0001>
module attributes {stable_mosaic.version = 11 : i64} {
  func.func @_conv_partial_kernel(%arg0: i32, %arg1: memref<256x256xf32, #tpu.memory_space<vmem>>, %arg2: memref<256x128xf32, #tpu.memory_space<vmem>>, %arg3: memref<256x128xf32, #tpu.memory_space<vmem>>, %arg4: memref<1x1x128xf32, #tpu.memory_space<vmem>>, %arg5: memref<1x1x128xf32, #tpu.memory_space<vmem>>) attributes {dimension_semantics = [#tpu.dimension_semantics<parallel>], iteration_bounds = array<i64: 2>, scalar_prefetch = 0 : i64, scratch_operands = 0 : i64, tpu.core_type = #tpu.core_type<tc>, window_params = [{transform_indices = @transform_0, window_bounds = array<i64: 256, 256>}, {pipeline_mode = #tpu.pipeline_mode<synchronous>, transform_indices = @transform_1, window_bounds = array<i64: 256, 128>}, {transform_indices = @transform_2, window_bounds = array<i64: 256, 128>}, {transform_indices = @transform_3, window_bounds = array<i64: 1, 1, 128>}, {transform_indices = @transform_4, window_bounds = array<i64: 1, 1, 128>}]} {
    %c0 = arith.constant 0 : index
    %c0_0 = arith.constant 0 : index
    %0 = vector.load %arg1[%c0, %c0_0] : memref<256x256xf32, #tpu.memory_space<vmem>>, vector<256x256xf32>
    %c0_1 = arith.constant 0 : index
    %c0_2 = arith.constant 0 : index
    %1 = vector.load %arg2[%c0_1, %c0_2] : memref<256x128xf32, #tpu.memory_space<vmem>>, vector<256x128xf32>
    %cst = arith.constant dense<0.000000e+00> : vector<256x128xf32>
    %2 = tpu.matmul %0, %1, %cst {dimension_numbers = #tpu.dot_dimension_numbers<[1], [0], [0], [1], [0, 0, 1, 1], [], []>} : vector<256x256xf32>, vector<256x128xf32>, vector<256x128xf32> -> vector<256x128xf32>
    %c0_3 = arith.constant 0 : index
    %c0_4 = arith.constant 0 : index
    %3 = vector.load %arg3[%c0_3, %c0_4] : memref<256x128xf32, #tpu.memory_space<vmem>>, vector<256x128xf32>
    tpu.vector_store %arg3[%c0_3, %c0_4], %2 {strides = array<i32>} : memref<256x128xf32, #tpu.memory_space<vmem>>, vector<256x128xf32>,
    %cst_5 = arith.constant dense<0.000000e+00> : vector<128xf32>
    %4 = vector.multi_reduction <add>, %2, %cst_5 [0] : vector<256x128xf32> to vector<128xf32>
    %5 = vector.shape_cast %4 : vector<128xf32> to vector<1x128xf32>
    %c0_6 = arith.constant 0 : index
    %c0_7 = arith.constant 0 : index
    %c0_8 = arith.constant 0 : index
    %6 = vector.load %arg4[%c0_6, %c0_7, %c0_8] : memref<1x1x128xf32, #tpu.memory_space<vmem>>, vector<1x1x128xf32>
    %7 = vector.shape_cast %6 : vector<1x1x128xf32> to vector<1x128xf32>
    %8 = vector.shape_cast %5 : vector<1x128xf32> to vector<1x1x128xf32>
    tpu.vector_store %arg4[%c0_6, %c0_7, %c0_8], %8 {strides = array<i32>} : memref<1x1x128xf32, #tpu.memory_space<vmem>>, vector<1x1x128xf32>,
    %9 = arith.mulf %2, %2 : vector<256x128xf32>
    %cst_9 = arith.constant dense<0.000000e+00> : vector<128xf32>
    %10 = vector.multi_reduction <add>, %9, %cst_9 [0] : vector<256x128xf32> to vector<128xf32>
    %11 = vector.shape_cast %10 : vector<128xf32> to vector<1x128xf32>
    %c0_10 = arith.constant 0 : index
    %c0_11 = arith.constant 0 : index
    %c0_12 = arith.constant 0 : index
    %12 = vector.load %arg5[%c0_10, %c0_11, %c0_12] : memref<1x1x128xf32, #tpu.memory_space<vmem>>, vector<1x1x128xf32>
    %13 = vector.shape_cast %12 : vector<1x1x128xf32> to vector<1x128xf32>
    %14 = vector.shape_cast %11 : vector<1x128xf32> to vector<1x1x128xf32>
    tpu.vector_store %arg5[%c0_10, %c0_11, %c0_12], %14 {strides = array<i32>} : memref<1x1x128xf32, #tpu.memory_space<vmem>>, vector<1x1x128xf32>,
    return
  }
  func.func @transform_0(%arg0: i32) -> (i32, i32) {
    %c0_i32 = arith.constant 0 : i32
    %c0_i32_0 = arith.constant 0 : i32
    return %arg0, %c0_i32 : i32, i32
  }
  func.func @transform_1(%arg0: i32) -> (i32, i32) {
    %c0_i32 = arith.constant 0 : i32
    %c0_i32_0 = arith.constant 0 : i32
    %c0_i32_1 = arith.constant 0 : i32
    return %c0_i32, %c0_i32_0 : i32, i32
  }
  func.func @transform_2(%arg0: i32) -> (i32, i32) {
    %c0_i32 = arith.constant 0 : i32
    %c0_i32_0 = arith.constant 0 : i32
    return %arg0, %c0_i32 : i32, i32
  }
  func.func @transform_3(%arg0: i32) -> (i32, i32, i32) {
    %c0_i32 = arith.constant 0 : i32
    %c0_i32_0 = arith.constant 0 : i32
    %c0_i32_1 = arith.constant 0 : i32
    return %arg0, %c0_i32, %c0_i32_0 : i32, i32, i32
  }
  func.func @transform_4(%arg0: i32) -> (i32, i32, i32) {
    %c0_i32 = arith.constant 0 : i32
    %c0_i32_0 = arith.constant 0 : i32
    %c0_i32_1 = arith.constant 0 : i32
    return %arg0, %c0_i32, %c0_i32_0 : i32, i32, i32
  }
}

</mosaic_0001>

<llo_original>
// kernel: tpu_custom_call.1
$region0: #{tpu_custom_call.1}
  #allocation0 [shape = 'u32[]', space=smem, size = 0x4, offset = 0x4, fixed_abs, tag = 'smem constant byte address 0x4 - core index']
  #allocation1 [shape = 'u32[72,128]{1,0:T(1,128)}', space=vmem, size = 0x9000, scoped, tag = 'internal scratch']
  %s0 = inlined_call_operand.hbm [shape: f32[512,256], index: 0, kind: input, shape index: {}]
  %s1 = inlined_call_operand.hbm [shape: f32[256,128], index: 1, kind: input, shape index: {}]
  %s2 = inlined_call_operand.hbm [shape: f32[512,128], index: 2, kind: output, shape index: {0}]
  %s3 = inlined_call_operand.hbm [shape: f32[2,1,128], index: 3, kind: output, shape index: {1}]
  %s4 = inlined_call_operand.hbm [shape: f32[2,1,128], index: 4, kind: output, shape index: {2}]
  %5 = xla_tuple %s2, %s3, %s4
  %s6 = sld [smem:[#allocation0]]
  $region65: #{tpu_custom_call.1} parent=0
    _
  %s8 = ssub.s32 1, %s6
  %s9 = scalar_select 0, %s8, %s6
  $region1: #{tpu_custom_call.1} parent=0
    #allocation2 [shape = 'u8[524288]{0}', space=vmem, size = 0x80000, scoped, tag = 'input window, operand 0']
    #allocation3 [shape = 's32[2]{0}', space=sflag, size = 0x8, scoped, tag = 'scoped memory for tpu_custom_call.1']
    #allocation4 [shape = 's32[2]{0}', space=sflag, size = 0x8, scoped, tag = 'scoped memory for tpu_custom_call.1']
    #allocation5 [shape = 'u8[131072]{0}', space=vmem, size = 0x20000, scoped, tag = 'input window, operand 1, single buffered']
    #allocation6 [shape = 's32[1]{0}', space=sflag, size = 0x4, scoped, tag = 'scoped memory for tpu_custom_call.1']
    #allocation7 [shape = 'u8[262144]{0}', space=vmem, size = 0x40000, scoped, tag = 'output window, operand 0']
    #allocation8 [shape = 'u8[1024]{0}', space=vmem, size = 0x400, scoped, tag = 'output window, operand 1']
    #allocation9 [shape = 's32[2]{0}', space=sflag, size = 0x8, scoped, tag = 'scoped memory for tpu_custom_call.1']
    #allocation10 [shape = 'u8[1024]{0}', space=vmem, size = 0x400, scoped, tag = 'output window, operand 2']
    %10 = vsyncpa [#allocation3], 0
    %s11 = scalar_lea.sflag [#allocation3], 1
    %12 = vsyncpa %s11, 0
    %13 = vsyncpa [#allocation6], 0
    %14 = vsyncpa [#allocation4], 0
    %s15 = scalar_lea.sflag [#allocation4], 1
    %16 = vsyncpa %s15, 0
    %17 = vsyncpa [#allocation9], 0
    %s18 = scalar_lea.sflag [#allocation9], 1
    %19 = vsyncpa %s18, 0
    loop: start=0, step=1, limit=4
    $region2: #{tpu_custom_call.1} parent=1 // loop_pre_header
      _
    $region3: #{tpu_custom_call.1} parent=1 // loop_header
      %s21 = sphi 0, %s25
      %p22 = scmp.ge.s32.totalorder %s21, 4
      %s31 = sphi 0, %s33
      %s34 = sphi 0, %s31
      %s35 = sphi 0, %s34
      %s51 = sphi 0, %s35
      %s55 = sphi 0, %s55
      %s57 = sphi 0, %s55
      %s58 = sphi 0, %s57
      %s72 = sphi 0, %s58
      %s78 = sphi 0, %s80
      %s81 = sphi 0, %s78
      %s82 = sphi 0, %s81
      %s98 = sphi 0, %s82
      %s104 = sphi 0, %s106
      %s107 = sphi 0, %s104
      %s108 = sphi 0, %s107
      %s124 = sphi 0, %s108
      %s130 = sphi 0, %s132
      %s133 = sphi 0, %s130
      %s134 = sphi 0, %s133
      %s150 = sphi 0, %s134
    $region4: #{tpu_custom_call.1} parent=1 // loop_header_branch
      %24 = sbr.rel (%p22) target = $region8
    $region5: #{tpu_custom_call.1} parent=1 // loop_body
      %s26 = ssub.s32 %s21, 1
      %s27 = ssub.s32 %s21, 2
      %s28 = sadd.s32 %s21, 1
      %s29 = ssub.s32 %s21, %s28
      %p30 = scmp.eq.s32.totalorder %s29, 0
      %s32 = sadd.s32 %s31, 1
      %s33 = scalar_select %p30, %s31, %s32
      %p36 = pneg %p30
      %p37 = scmp.eq.s32.totalorder %s21, 1
      %p38 = por %p36, %p37
      %p39 = scmp.ne.s32.totalorder %s31, %s34
      %p40 = scmp.eq.s32.totalorder %s21, 0
      %p41 = por %p39, %p40
      %p42 = scmp.ne.s32.totalorder %s31, %s34
      %p43 = scmp.eq.s32.totalorder %s26, 1
      %p44 = por %p42, %p43
      %p45 = scmp.ne.s32.totalorder %s34, %s35
      %p46 = scmp.eq.s32.totalorder %s26, 0
      %p47 = por %p45, %p46
      %p48 = scmp.ne.s32.totalorder %s34, %s35
      %p49 = scmp.eq.s32.totalorder %s27, 1
      %p50 = por %p48, %p49
      %p52 = scmp.ne.s32.totalorder %s35, %s51
      %p53 = scmp.eq.s32.totalorder %s27, 0
      %p54 = por %p52, %p53
      %s56 = sadd.s32 %s55, 1
      %p59 = scmp.eq.s32.totalorder %s21, 1
      %p60 = scmp.ne.s32.totalorder %s55, %s57
      %p61 = scmp.eq.s32.totalorder %s21, 0
      %p62 = por %p60, %p61
      %p63 = scmp.ne.s32.totalorder %s55, %s57
      %p64 = scmp.eq.s32.totalorder %s26, 1
      %p65 = por %p63, %p64
      %p66 = scmp.ne.s32.totalorder %s57, %s58
      %p67 = scmp.eq.s32.totalorder %s26, 0
      %p68 = por %p66, %p67
      %p69 = scmp.ne.s32.totalorder %s57, %s58
      %p70 = scmp.eq.s32.totalorder %s27, 1
      %p71 = por %p69, %p70
      %p73 = scmp.ne.s32.totalorder %s58, %s72
      %p74 = scmp.eq.s32.totalorder %s27, 0
      %p75 = por %p73, %p74
      %s76 = ssub.s32 %s21, %s28
      %p77 = scmp.eq.s32.totalorder %s76, 0
      %s79 = sadd.s32 %s78, 1
      %s80 = scalar_select %p77, %s78, %s79
      %p83 = pneg %p77
      %p84 = scmp.eq.s32.totalorder %s21, 1
      %p85 = por %p83, %p84
      %p86 = scmp.ne.s32.totalorder %s78, %s81
      %p87 = scmp.eq.s32.totalorder %s21, 0
      %p88 = por %p86, %p87
      %p89 = scmp.ne.s32.totalorder %s78, %s81
      %p90 = scmp.eq.s32.totalorder %s26, 1
      %p91 = por %p89, %p90
      %p92 = scmp.ne.s32.totalorder %s81, %s82
      %p93 = scmp.eq.s32.totalorder %s26, 0
      %p94 = por %p92, %p93
      %p95 = scmp.ne.s32.totalorder %s81, %s82
      %p96 = scmp.eq.s32.totalorder %s27, 1
      %p97 = por %p95, %p96
      %p99 = scmp.ne.s32.totalorder %s82, %s98
      %p100 = scmp.eq.s32.totalorder %s27, 0
      %p101 = por %p99, %p100
      %s102 = ssub.s32 %s21, %s28
      %p103 = scmp.eq.s32.totalorder %s102, 0
      %s105 = sadd.s32 %s104, 1
      %s106 = scalar_select %p103, %s104, %s105
      %p109 = pneg %p103
      %p110 = scmp.eq.s32.totalorder %s21, 1
      %p111 = por %p109, %p110
      %p112 = scmp.ne.s32.totalorder %s104, %s107
      %p113 = scmp.eq.s32.totalorder %s21, 0
      %p114 = por %p112, %p113
      %p115 = scmp.ne.s32.totalorder %s104, %s107
      %p116 = scmp.eq.s32.totalorder %s26, 1
      %p117 = por %p115, %p116
      %p118 = scmp.ne.s32.totalorder %s107, %s108
      %p119 = scmp.eq.s32.totalorder %s26, 0
      %p120 = por %p118, %p119
      %p121 = scmp.ne.s32.totalorder %s107, %s108
      %p122 = scmp.eq.s32.totalorder %s27, 1
      %p123 = por %p121, %p122
      %p125 = scmp.ne.s32.totalorder %s108, %s124
      %p126 = scmp.eq.s32.totalorder %s27, 0
      %p127 = por %p125, %p126
      %s128 = ssub.s32 %s21, %s28
      %p129 = scmp.eq.s32.totalorder %s128, 0
      %s131 = sadd.s32 %s130, 1
      %s132 = scalar_select %p129, %s130, %s131
      %p135 = pneg %p129
      %p136 = scmp.eq.s32.totalorder %s21, 1
      %p137 = por %p135, %p136
      %p138 = scmp.ne.s32.totalorder %s130, %s133
      %p139 = scmp.eq.s32.totalorder %s21, 0
      %p140 = por %p138, %p139
      %p141 = scmp.ne.s32.totalorder %s130, %s133
      %p142 = scmp.eq.s32.totalorder %s26, 1
      %p143 = por %p141, %p142
      %p144 = scmp.ne.s32.totalorder %s133, %s134
      %p145 = scmp.eq.s32.totalorder %s26, 0
      %p146 = por %p144, %p145
      %p147 = scmp.ne.s32.totalorder %s133, %s134
      %p148 = scmp.eq.s32.totalorder %s27, 1
      %p149 = por %p147, %p148
      %p151 = scmp.ne.s32.totalorder %s134, %s150
      %p152 = scmp.eq.s32.totalorder %s27, 0
      %p153 = por %p151, %p152
      %p154 = scmp.le.s32.totalorder 1, %s21
      %p155 = scmp.lt.s32.totalorder %s21, 3
      %p156 = pnand %p154, %p155
      %p157 = pneg %p156
      // Predicated region
      $region9: #{tpu_custom_call.1} parent=5 // pred_check
        _
      $region10: #{tpu_custom_call.1} parent=5 // pred_check_branch
        %159 = sbr.rel (%p156) target = $region12
      $region11: #{tpu_custom_call.1} parent=5 // pred_region
        %s160 = ssub.s32 %s21, 1
        // Predicated region
        $region13: #{tpu_custom_call.1} parent=11 // pred_check
          %p161 = pneg %p68
        $region14: #{tpu_custom_call.1} parent=11 // pred_check_branch
          %163 = sbr.rel (%p161) target = $region16
        $region15: #{tpu_custom_call.1} parent=11 // pred_region
          %165 = vsyncadd [#allocation6], 0
          %s166 = sshll.u32 %s1, 4
          %s167 = int_to_ptr.hbm [resolvable:$true] %s166
          %s168 = sshll.u32 [#allocation5], 4
          %s169 = int_to_ptr.vmem [resolvable:$true] %s168
          %174 = dma.hbm_to_vmem [thread:$0]  %s167, 4096, %s169, [#allocation6], 128, 128, 8
        $region16: #{tpu_custom_call.1} parent=11 // pred_fallthru
          _
      $region12: #{tpu_custom_call.1} parent=5 // pred_fallthru
        _
      %p175 = scmp.lt.s32.totalorder %s21, 2
      // Predicated region
      $region17: #{tpu_custom_call.1} parent=5 // pred_check
        %p176 = pneg %p175
      $region18: #{tpu_custom_call.1} parent=5 // pred_check_branch
        %178 = sbr.rel (%p176) target = $region20
      $region19: #{tpu_custom_call.1} parent=5 // pred_region
        // Predicated region
        $region21: #{tpu_custom_call.1} parent=19 // pred_check
          %p179 = pneg %p41
        $region22: #{tpu_custom_call.1} parent=19 // pred_check_branch
          %181 = sbr.rel (%p179) target = $region24
        $region23: #{tpu_custom_call.1} parent=19 // pred_region
          %s182 = sand.u32 %s31, 1
          %s183 = scalar_lea.sflag [#allocation3], %s182
          %s184 = sand.u32 %s31, 1
          %s185 = smul.addr %s184, 512
          %s186 = scalar_lea.vmem [#allocation2], %s185
          %s187 = smul.u32 32, %s21
          %189 = vsyncadd %s183, 0
          %s190 = smul.addr %s187, 2
          %s191 = smul.addr %s190, 8
          %s192 = scalar_lea.hbm %s0, %s191
          %s193 = sshll.u32 %s192, 4
          %s194 = int_to_ptr.hbm [resolvable:$true] %s193
          %s195 = sshll.u32 %s186, 4
          %s196 = int_to_ptr.vmem [resolvable:$true] %s195
          %201 = dma.hbm_to_vmem [thread:$0]  %s194, 8192, %s196, %s183, 256, 256, 16
        $region24: #{tpu_custom_call.1} parent=19 // pred_fallthru
          _
      $region20: #{tpu_custom_call.1} parent=5 // pred_fallthru
        _
      %p202 = scmp.le.s32.totalorder 1, %s21
      %p203 = scmp.lt.s32.totalorder %s21, 3
      %p204 = pnand %p202, %p203
      %p205 = pneg %p204
      // Predicated region
      $region25: #{tpu_custom_call.1} parent=5 // pred_check
        _
      $region26: #{tpu_custom_call.1} parent=5 // pred_check_branch
        %207 = sbr.rel (%p204) target = $region28
      $region27: #{tpu_custom_call.1} parent=5 // pred_region
        %s208 = ssub.s32 %s21, 1
        %s209 = sand.u32 %s34, 1
        %s210 = scalar_lea.sflag [#allocation3], %s209
        %s211 = sand.u32 %s34, 1
        %s212 = smul.addr %s211, 512
        %s213 = scalar_lea.vmem [#allocation2], %s212
        // Predicated region
        $region29: #{tpu_custom_call.1} parent=27 // pred_check
          %p214 = pneg %p47
        $region30: #{tpu_custom_call.1} parent=27 // pred_check_branch
          %216 = sbr.rel (%p214) target = $region32
        $region31: #{tpu_custom_call.1} parent=27 // pred_region
          %218 = dma.done %s210, 8192
        $region32: #{tpu_custom_call.1} parent=27 // pred_fallthru
          _
        // Predicated region
        $region33: #{tpu_custom_call.1} parent=27 // pred_check
          %p219 = pneg %p68
        $region34: #{tpu_custom_call.1} parent=27 // pred_check_branch
          %221 = sbr.rel (%p219) target = $region36
        $region35: #{tpu_custom_call.1} parent=27 // pred_region
          %223 = dma.done [#allocation6], 4096
        $region36: #{tpu_custom_call.1} parent=27 // pred_fallthru
          _
        %s224 = sand.u32 %s34, 1
        %s225 = scalar_lea.sflag [#allocation3], %s224
        %s226 = sand.u32 %s34, 1
        %s227 = smul.addr %s226, 512
        %s228 = scalar_lea.vmem [#allocation2], %s227
        %p229 = pneg %p47
        %p230 = pneg %p44
        %p231 = pneg %p68
        %p232 = pneg %p65
        %p233 = pneg %p94
        %p234 = pneg %p91
        %s235 = sand.u32 %s81, 1
        %s236 = scalar_lea.sflag [#allocation4], %s235
        %s237 = sand.u32 %s81, 1
        %s238 = smul.addr %s237, 256
        %s239 = scalar_lea.vmem [#allocation7], %s238
        %p240 = pneg %p120
        %p241 = pneg %p117
        %s242 = sand.u32 %s26, 1
        %s243 = scalar_lea.sflag [#allocation9], %s242
        %s244 = sand.u32 %s107, 1
        %s245 = scalar_lea.vmem [#allocation8], %s244
        %p246 = pneg %p146
        %p247 = pneg %p143
        %s248 = sand.u32 %s26, 1
        %s249 = scalar_lea.sflag [#allocation9], %s248
        %s250 = sand.u32 %s133, 1
        %s251 = scalar_lea.vmem [#allocation10], %s250
        %s252 = smul.u32 32, %s26
        %s253 = smul.u32 32, %s26
        %v254 = vld [vmem:[%s213] sm:$0xff]
        %v255 = vld [vmem:[%s213 + $0x8] sm:$0xff]
        %v256 = vld [vmem:[%s213 + $0x10] sm:$0xff]
        %v257 = vld [vmem:[%s213 + $0x18] sm:$0xff]
        %v258 = vld [vmem:[%s213 + $0x20] sm:$0xff]
        %v259 = vld [vmem:[%s213 + $0x28] sm:$0xff]
        %v260 = vld [vmem:[%s213 + $0x30] sm:$0xff]
        %v261 = vld [vmem:[%s213 + $0x38] sm:$0xff]
        %v262 = vld [vmem:[%s213 + $0x40] sm:$0xff]
        %v263 = vld [vmem:[%s213 + $0x48] sm:$0xff]
        %v264 = vld [vmem:[%s213 + $0x50] sm:$0xff]
        %v265 = vld [vmem:[%s213 + $0x58] sm:$0xff]
        %v266 = vld [vmem:[%s213 + $0x60] sm:$0xff]
        %v267 = vld [vmem:[%s213 + $0x68] sm:$0xff]
        %v268 = vld [vmem:[%s213 + $0x70] sm:$0xff]
        %v269 = vld [vmem:[%s213 + $0x78] sm:$0xff]
        %v270 = vld [vmem:[%s213 + $0x80] sm:$0xff]
        %v271 = vld [vmem:[%s213 + $0x88] sm:$0xff]
        %v272 = vld [vmem:[%s213 + $0x90] sm:$0xff]
        %v273 = vld [vmem:[%s213 + $0x98] sm:$0xff]
        %v274 = vld [vmem:[%s213 + $0xa0] sm:$0xff]
        %v275 = vld [vmem:[%s213 + $0xa8] sm:$0xff]
        %v276 = vld [vmem:[%s213 + $0xb0] sm:$0xff]
        %v277 = vld [vmem:[%s213 + $0xb8] sm:$0xff]
        %v278 = vld [vmem:[%s213 + $0xc0] sm:$0xff]
        %v279 = vld [vmem:[%s213 + $0xc8] sm:$0xff]
        %v280 = vld [vmem:[%s213 + $0xd0] sm:$0xff]
        %v281 = vld [vmem:[%s213 + $0xd8] sm:$0xff]
        %v282 = vld [vmem:[%s213 + $0xe0] sm:$0xff]
        %v283 = vld [vmem:[%s213 + $0xe8] sm:$0xff]
        %v284 = vld [vmem:[%s213 + $0xf0] sm:$0xff]
        %v285 = vld [vmem:[%s213 + $0xf8] sm:$0xff]
        %v286 = vld [vmem:[%s213 + $0x100] sm:$0xff]
        %v287 = vld [vmem:[%s213 + $0x108] sm:$0xff]
        %v288 = vld [vmem:[%s213 + $0x110] sm:$0xff]
        %v289 = vld [vmem:[%s213 + $0x118] sm:$0xff]
        %v290 = vld [vmem:[%s213 + $0x120] sm:$0xff]
        %v291 = vld [vmem:[%s213 + $0x128] sm:$0xff]
        %v292 = vld [vmem:[%s213 + $0x130] sm:$0xff]
        %v293 = vld [vmem:[%s213 + $0x138] sm:$0xff]
        %v294 = vld [vmem:[%s213 + $0x140] sm:$0xff]
        %v295 = vld [vmem:[%s213 + $0x148] sm:$0xff]
        %v296 = vld [vmem:[%s213 + $0x150] sm:$0xff]
        %v297 = vld [vmem:[%s213 + $0x158] sm:$0xff]
        %v298 = vld [vmem:[%s213 + $0x160] sm:$0xff]
        %v299 = vld [vmem:[%s213 + $0x168] sm:$0xff]
        %v300 = vld [vmem:[%s213 + $0x170] sm:$0xff]
        %v301 = vld [vmem:[%s213 + $0x178] sm:$0xff]
        %v302 = vld [vmem:[%s213 + $0x180] sm:$0xff]
        %v303 = vld [vmem:[%s213 + $0x188] sm:$0xff]
        %v304 = vld [vmem:[%s213 + $0x190] sm:$0xff]
        %v305 = vld [vmem:[%s213 + $0x198] sm:$0xff]
        %v306 = vld [vmem:[%s213 + $0x1a0] sm:$0xff]
        %v307 = vld [vmem:[%s213 + $0x1a8] sm:$0xff]
        %v308 = vld [vmem:[%s213 + $0x1b0] sm:$0xff]
        %v309 = vld [vmem:[%s213 + $0x1b8] sm:$0xff]
        %v310 = vld [vmem:[%s213 + $0x1c0] sm:$0xff]
        %v311 = vld [vmem:[%s213 + $0x1c8] sm:$0xff]
        %v312 = vld [vmem:[%s213 + $0x1d0] sm:$0xff]
        %v313 = vld [vmem:[%s213 + $0x1d8] sm:$0xff]
        %v314 = vld [vmem:[%s213 + $0x1e0] sm:$0xff]
        %v315 = vld [vmem:[%s213 + $0x1e8] sm:$0xff]
        %v316 = vld [vmem:[%s213 + $0x1f0] sm:$0xff]
        %v317 = vld [vmem:[%s213 + $0x1f8] sm:$0xff]
        %v318 = vld [vmem:[#allocation5] sm:$0xff]
        %v319 = vld [vmem:[#allocation5 + $0x8] sm:$0xff]
        %v320 = vld [vmem:[#allocation5 + $0x10] sm:$0xff]
        %v321 = vld [vmem:[#allocation5 + $0x18] sm:$0xff]
        %v322 = vld [vmem:[#allocation5 + $0x20] sm:$0xff]
        %v323 = vld [vmem:[#allocation5 + $0x28] sm:$0xff]
        %v324 = vld [vmem:[#allocation5 + $0x30] sm:$0xff]
        %v325 = vld [vmem:[#allocation5 + $0x38] sm:$0xff]
        %v326 = vld [vmem:[#allocation5 + $0x40] sm:$0xff]
        %v327 = vld [vmem:[#allocation5 + $0x48] sm:$0xff]
        %v328 = vld [vmem:[#allocation5 + $0x50] sm:$0xff]
        %v329 = vld [vmem:[#allocation5 + $0x58] sm:$0xff]
        %v330 = vld [vmem:[#allocation5 + $0x60] sm:$0xff]
        %v331 = vld [vmem:[#allocation5 + $0x68] sm:$0xff]
        %v332 = vld [vmem:[#allocation5 + $0x70] sm:$0xff]
        %v333 = vld [vmem:[#allocation5 + $0x78] sm:$0xff]
        %v334 = vld [vmem:[#allocation5 + $0x80] sm:$0xff]
        %v335 = vld [vmem:[#allocation5 + $0x88] sm:$0xff]
        %v336 = vld [vmem:[#allocation5 + $0x90] sm:$0xff]
        %v337 = vld [vmem:[#allocation5 + $0x98] sm:$0xff]
        %v338 = vld [vmem:[#allocation5 + $0xa0] sm:$0xff]
        %v339 = vld [vmem:[#allocation5 + $0xa8] sm:$0xff]
        %v340 = vld [vmem:[#allocation5 + $0xb0] sm:$0xff]
        %v341 = vld [vmem:[#allocation5 + $0xb8] sm:$0xff]
        %v342 = vld [vmem:[#allocation5 + $0xc0] sm:$0xff]
        %v343 = vld [vmem:[#allocation5 + $0xc8] sm:$0xff]
        %v344 = vld [vmem:[#allocation5 + $0xd0] sm:$0xff]
        %v345 = vld [vmem:[#allocation5 + $0xd8] sm:$0xff]
        %v346 = vld [vmem:[#allocation5 + $0xe0] sm:$0xff]
        %v347 = vld [vmem:[#allocation5 + $0xe8] sm:$0xff]
        %v348 = vld [vmem:[#allocation5 + $0xf0] sm:$0xff]
        %v349 = vld [vmem:[#allocation5 + $0xf8] sm:$0xff]
        %350 = vmatpush.msra.mxu0 %v333
        %351 = vmatpush.msra.mxu0 %v332
        %352 = vmatpush.msra.mxu0 %v331
        %353 = vmatpush.msra.mxu0 %v330
        %354 = vmatpush.msra.mxu0 %v329
        %355 = vmatpush.msra.mxu0 %v328
        %356 = vmatpush.msra.mxu0 %v327
        %357 = vmatpush.msra.mxu0 %v326
        %358 = vmatpush.msra.mxu0 %v325
        %359 = vmatpush.msra.mxu0 %v324
        %360 = vmatpush.msra.mxu0 %v323
        %361 = vmatpush.msra.mxu0 %v322
        %362 = vmatpush.msra.mxu0 %v321
        %363 = vmatpush.msra.mxu0 %v320
        %364 = vmatpush.msra.mxu0 %v319
        %365 = vmatpush.msra.mxu0 %v318
        %366 = vmatmul.f32.gmra.mxu0 %v254
        %v367 = vpop.f32.mrf.mxu0
        %v368 = vadd.f32 0.0, %v367
        %369 = vmatmul.f32.gmra.mxu0 %v256
        %v370 = vpop.f32.mrf.mxu0
        %v371 = vadd.f32 0.0, %v370
        %372 = vmatmul.f32.gmra.mxu0 %v258
        %v373 = vpop.f32.mrf.mxu0
        %v374 = vadd.f32 0.0, %v373
        %375 = vmatmul.f32.gmra.mxu0 %v260
        %v376 = vpop.f32.mrf.mxu0
        %v377 = vadd.f32 0.0, %v376
        %378 = vmatmul.f32.gmra.mxu0 %v262
        %v379 = vpop.f32.mrf.mxu0
        %v380 = vadd.f32 0.0, %v379
        %381 = vmatmul.f32.gmra.mxu0 %v264
        %v382 = vpop.f32.mrf.mxu0
        %v383 = vadd.f32 0.0, %v382
        %384 = vmatmul.f32.gmra.mxu0 %v266
        %v385 = vpop.f32.mrf.mxu0
        %v386 = vadd.f32 0.0, %v385
        %387 = vmatmul.f32.gmra.mxu0 %v268
        %v388 = vpop.f32.mrf.mxu0
        %v389 = vadd.f32 0.0, %v388
        %390 = vmatmul.f32.gmra.mxu0 %v270
        %v391 = vpop.f32.mrf.mxu0
        %v392 = vadd.f32 0.0, %v391
        %393 = vmatmul.f32.gmra.mxu0 %v272
        %v394 = vpop.f32.mrf.mxu0
        %v395 = vadd.f32 0.0, %v394
        %396 = vmatmul.f32.gmra.mxu0 %v274
        %v397 = vpop.f32.mrf.mxu0
        %v398 = vadd.f32 0.0, %v397
        %399 = vmatmul.f32.gmra.mxu0 %v276
        %v400 = vpop.f32.mrf.mxu0
        %v401 = vadd.f32 0.0, %v400
        %402 = vmatmul.f32.gmra.mxu0 %v278
        %v403 = vpop.f32.mrf.mxu0
        %v404 = vadd.f32 0.0, %v403
        %405 = vmatmul.f32.gmra.mxu0 %v280
        %v406 = vpop.f32.mrf.mxu0
        %v407 = vadd.f32 0.0, %v406
        %408 = vmatmul.f32.gmra.mxu0 %v282
        %v409 = vpop.f32.mrf.mxu0
        %v410 = vadd.f32 0.0, %v409
        %411 = vmatmul.f32.gmra.mxu0 %v284
        %v412 = vpop.f32.mrf.mxu0
        %v413 = vadd.f32 0.0, %v412
        %414 = vmatmul.f32.gmra.mxu0 %v286
        %v415 = vpop.f32.mrf.mxu0
        %v416 = vadd.f32 0.0, %v415
        %417 = vmatmul.f32.gmra.mxu0 %v288
        %v418 = vpop.f32.mrf.mxu0
        %v419 = vadd.f32 0.0, %v418
        %420 = vmatmul.f32.gmra.mxu0 %v290
        %v421 = vpop.f32.mrf.mxu0
        %v422 = vadd.f32 0.0, %v421
        %423 = vmatmul.f32.gmra.mxu0 %v292
        %v424 = vpop.f32.mrf.mxu0
        %v425 = vadd.f32 0.0, %v424
        %426 = vmatmul.f32.gmra.mxu0 %v294
        %v427 = vpop.f32.mrf.mxu0
        %v428 = vadd.f32 0.0, %v427
        %429 = vmatmul.f32.gmra.mxu0 %v296
        %v430 = vpop.f32.mrf.mxu0
        %v431 = vadd.f32 0.0, %v430
        %432 = vmatmul.f32.gmra.mxu0 %v298
        %v433 = vpop.f32.mrf.mxu0
        %v434 = vadd.f32 0.0, %v433
        %435 = vmatmul.f32.gmra.mxu0 %v300
        %v436 = vpop.f32.mrf.mxu0
        %v437 = vadd.f32 0.0, %v436
        %438 = vmatmul.f32.gmra.mxu0 %v302
        %v439 = vpop.f32.mrf.mxu0
        %v440 = vadd.f32 0.0, %v439
        %441 = vmatmul.f32.gmra.mxu0 %v304
        %v442 = vpop.f32.mrf.mxu0
        %v443 = vadd.f32 0.0, %v442
        %444 = vmatmul.f32.gmra.mxu0 %v306
        %v445 = vpop.f32.mrf.mxu0
        %v446 = vadd.f32 0.0, %v445
        %447 = vmatmul.f32.gmra.mxu0 %v308
        %v448 = vpop.f32.mrf.mxu0
        %v449 = vadd.f32 0.0, %v448
        %450 = vmatmul.f32.gmra.mxu0 %v310
        %v451 = vpop.f32.mrf.mxu0
        %v452 = vadd.f32 0.0, %v451
        %453 = vmatmul.f32.gmra.mxu0 %v312
        %v454 = vpop.f32.mrf.mxu0
        %v455 = vadd.f32 0.0, %v454
        %456 = vmatmul.f32.gmra.mxu0 %v314
        %v457 = vpop.f32.mrf.mxu0
        %v458 = vadd.f32 0.0, %v457
        %459 = vmatmul.f32.gmra.mxu0 %v316
        %v460 = vpop.f32.mrf.mxu0
        %v461 = vadd.f32 0.0, %v460
        %462 = vdwg.mxu0
        %463 = vmatpush.msra.mxu0 %v349
        %464 = vmatpush.msra.mxu0 %v348
        %465 = vmatpush.msra.mxu0 %v347
        %466 = vmatpush.msra.mxu0 %v346
        %467 = vmatpush.msra.mxu0 %v345
        %468 = vmatpush.msra.mxu0 %v344
        %469 = vmatpush.msra.mxu0 %v343
        %470 = vmatpush.msra.mxu0 %v342
        %471 = vmatpush.msra.mxu0 %v341
        %472 = vmatpush.msra.mxu0 %v340
        %473 = vmatpush.msra.mxu0 %v339
        %474 = vmatpush.msra.mxu0 %v338
        %475 = vmatpush.msra.mxu0 %v337
        %476 = vmatpush.msra.mxu0 %v336
        %477 = vmatpush.msra.mxu0 %v335
        %478 = vmatpush.msra.mxu0 %v334
        %479 = vmatmul.f32.gmra.mxu0 %v255
        %v480 = vpop.f32.mrf.mxu0
        %v481 = vadd.f32 %v368, %v480
        %482 = vmatmul.f32.gmra.mxu0 %v257
        %v483 = vpop.f32.mrf.mxu0
        %v484 = vadd.f32 %v371, %v483
        %485 = vmatmul.f32.gmra.mxu0 %v259
        %v486 = vpop.f32.mrf.mxu0
        %v487 = vadd.f32 %v374, %v486
        %488 = vmatmul.f32.gmra.mxu0 %v261
        %v489 = vpop.f32.mrf.mxu0
        %v490 = vadd.f32 %v377, %v489
        %491 = vmatmul.f32.gmra.mxu0 %v263
        %v492 = vpop.f32.mrf.mxu0
        %v493 = vadd.f32 %v380, %v492
        %494 = vmatmul.f32.gmra.mxu0 %v265
        %v495 = vpop.f32.mrf.mxu0
        %v496 = vadd.f32 %v383, %v495
        %497 = vmatmul.f32.gmra.mxu0 %v267
        %v498 = vpop.f32.mrf.mxu0
        %v499 = vadd.f32 %v386, %v498
        %500 = vmatmul.f32.gmra.mxu0 %v269
        %v501 = vpop.f32.mrf.mxu0
        %v502 = vadd.f32 %v389, %v501
        %503 = vmatmul.f32.gmra.mxu0 %v271
        %v504 = vpop.f32.mrf.mxu0
        %v505 = vadd.f32 %v392, %v504
        %506 = vmatmul.f32.gmra.mxu0 %v273
        %v507 = vpop.f32.mrf.mxu0
        %v508 = vadd.f32 %v395, %v507
        %509 = vmatmul.f32.gmra.mxu0 %v275
        %v510 = vpop.f32.mrf.mxu0
        %v511 = vadd.f32 %v398, %v510
        %512 = vmatmul.f32.gmra.mxu0 %v277
        %v513 = vpop.f32.mrf.mxu0
        %v514 = vadd.f32 %v401, %v513
        %515 = vmatmul.f32.gmra.mxu0 %v279
        %v516 = vpop.f32.mrf.mxu0
        %v517 = vadd.f32 %v404, %v516
        %518 = vmatmul.f32.gmra.mxu0 %v281
        %v519 = vpop.f32.mrf.mxu0
        %v520 = vadd.f32 %v407, %v519
        %521 = vmatmul.f32.gmra.mxu0 %v283
        %v522 = vpop.f32.mrf.mxu0
        %v523 = vadd.f32 %v410, %v522
        %524 = vmatmul.f32.gmra.mxu0 %v285
        %v525 = vpop.f32.mrf.mxu0
        %v526 = vadd.f32 %v413, %v525
        %527 = vmatmul.f32.gmra.mxu0 %v287
        %v528 = vpop.f32.mrf.mxu0
        %v529 = vadd.f32 %v416, %v528
        %530 = vmatmul.f32.gmra.mxu0 %v289
        %v531 = vpop.f32.mrf.mxu0
        %v532 = vadd.f32 %v419, %v531
        %533 = vmatmul.f32.gmra.mxu0 %v291
        %v534 = vpop.f32.mrf.mxu0
        %v535 = vadd.f32 %v422, %v534
        %536 = vmatmul.f32.gmra.mxu0 %v293
        %v537 = vpop.f32.mrf.mxu0
        %v538 = vadd.f32 %v425, %v537
        %539 = vmatmul.f32.gmra.mxu0 %v295
        %v540 = vpop.f32.mrf.mxu0
        %v541 = vadd.f32 %v428, %v540
        %542 = vmatmul.f32.gmra.mxu0 %v297
        %v543 = vpop.f32.mrf.mxu0
        %v544 = vadd.f32 %v431, %v543
        %545 = vmatmul.f32.gmra.mxu0 %v299
        %v546 = vpop.f32.mrf.mxu0
        %v547 = vadd.f32 %v434, %v546
        %548 = vmatmul.f32.gmra.mxu0 %v301
        %v549 = vpop.f32.mrf.mxu0
        %v550 = vadd.f32 %v437, %v549
        %551 = vmatmul.f32.gmra.mxu0 %v303
        %v552 = vpop.f32.mrf.mxu0
        %v553 = vadd.f32 %v440, %v552
        %554 = vmatmul.f32.gmra.mxu0 %v305
        %v555 = vpop.f32.mrf.mxu0
        %v556 = vadd.f32 %v443, %v555
        %557 = vmatmul.f32.gmra.mxu0 %v307
        %v558 = vpop.f32.mrf.mxu0
        %v559 = vadd.f32 %v446, %v558
        %560 = vmatmul.f32.gmra.mxu0 %v309
        %v561 = vpop.f32.mrf.mxu0
        %v562 = vadd.f32 %v449, %v561
        %563 = vmatmul.f32.gmra.mxu0 %v311
        %v564 = vpop.f32.mrf.mxu0
        %v565 = vadd.f32 %v452, %v564
        %566 = vmatmul.f32.gmra.mxu0 %v313
        %v567 = vpop.f32.mrf.mxu0
        %v568 = vadd.f32 %v455, %v567
        %569 = vmatmul.f32.gmra.mxu0 %v315
        %v570 = vpop.f32.mrf.mxu0
        %v571 = vadd.f32 %v458, %v570
        %572 = vmatmul.f32.gmra.mxu0 %v317
        %v573 = vpop.f32.mrf.mxu0
        %v574 = vadd.f32 %v461, %v573
        %575 = vdwg.mxu0
        %576 = vst [vmem:[%s239] sm:$0xff] %v481
        %577 = vst [vmem:[%s239 + $0x8] sm:$0xff] %v484
        %578 = vst [vmem:[%s239 + $0x10] sm:$0xff] %v487
        %579 = vst [vmem:[%s239 + $0x18] sm:$0xff] %v490
        %580 = vst [vmem:[%s239 + $0x20] sm:$0xff] %v493
        %581 = vst [vmem:[%s239 + $0x28] sm:$0xff] %v496
        %582 = vst [vmem:[%s239 + $0x30] sm:$0xff] %v499
        %583 = vst [vmem:[%s239 + $0x38] sm:$0xff] %v502
        %584 = vst [vmem:[%s239 + $0x40] sm:$0xff] %v505
        %585 = vst [vmem:[%s239 + $0x48] sm:$0xff] %v508
        %586 = vst [vmem:[%s239 + $0x50] sm:$0xff] %v511
        %587 = vst [vmem:[%s239 + $0x58] sm:$0xff] %v514
        %588 = vst [vmem:[%s239 + $0x60] sm:$0xff] %v517
        %589 = vst [vmem:[%s239 + $0x68] sm:$0xff] %v520
        %590 = vst [vmem:[%s239 + $0x70] sm:$0xff] %v523
        %591 = vst [vmem:[%s239 + $0x78] sm:$0xff] %v526
        %592 = vst [vmem:[%s239 + $0x80] sm:$0xff] %v529
        %593 = vst [vmem:[%s239 + $0x88] sm:$0xff] %v532
        %594 = vst [vmem:[%s239 + $0x90] sm:$0xff] %v535
        %595 = vst [vmem:[%s239 + $0x98] sm:$0xff] %v538
        %596 = vst [vmem:[%s239 + $0xa0] sm:$0xff] %v541
        %597 = vst [vmem:[%s239 + $0xa8] sm:$0xff] %v544
        %598 = vst [vmem:[%s239 + $0xb0] sm:$0xff] %v547
        %599 = vst [vmem:[%s239 + $0xb8] sm:$0xff] %v550
        %600 = vst [vmem:[%s239 + $0xc0] sm:$0xff] %v553
        %601 = vst [vmem:[%s239 + $0xc8] sm:$0xff] %v556
        %602 = vst [vmem:[%s239 + $0xd0] sm:$0xff] %v559
        %603 = vst [vmem:[%s239 + $0xd8] sm:$0xff] %v562
        %604 = vst [vmem:[%s239 + $0xe0] sm:$0xff] %v565
        %605 = vst [vmem:[%s239 + $0xe8] sm:$0xff] %v568
        %606 = vst [vmem:[%s239 + $0xf0] sm:$0xff] %v571
        %607 = vst [vmem:[%s239 + $0xf8] sm:$0xff] %v574
        %v608 = vadd.f32 %v481, %v484
        %v609 = vadd.f32 %v608, %v487
        %v610 = vadd.f32 %v609, %v490
        %v611 = vadd.f32 %v610, %v493
        %v612 = vadd.f32 %v611, %v496
        %v613 = vadd.f32 %v612, %v499
        %v614 = vadd.f32 %v613, %v502
        %v615 = vadd.f32 %v614, %v505
        %v616 = vadd.f32 %v615, %v508
        %v617 = vadd.f32 %v616, %v511
        %v618 = vadd.f32 %v617, %v514
        %v619 = vadd.f32 %v618, %v517
        %v620 = vadd.f32 %v619, %v520
        %v621 = vadd.f32 %v620, %v523
        %v622 = vadd.f32 %v621, %v526
        %v623 = vadd.f32 %v622, %v529
        %v624 = vadd.f32 %v623, %v532
        %v625 = vadd.f32 %v624, %v535
        %v626 = vadd.f32 %v625, %v538
        %v627 = vadd.f32 %v626, %v541
        %v628 = vadd.f32 %v627, %v544
        %v629 = vadd.f32 %v628, %v547
        %v630 = vadd.f32 %v629, %v550
        %v631 = vadd.f32 %v630, %v553
        %v632 = vadd.f32 %v631, %v556
        %v633 = vadd.f32 %v632, %v559
        %v634 = vadd.f32 %v633, %v562
        %v635 = vadd.f32 %v634, %v565
        %v636 = vadd.f32 %v635, %v568
        %v637 = vadd.f32 %v636, %v571
        %v638 = vadd.f32 %v637, %v574
        %v639 = vrot.slane %v638, 4
        %v640 = vadd.f32 %v638, %v639
        %v641 = vrot.slane %v640, 2
        %v642 = vadd.f32 %v640, %v641
        %v643 = vrot.slane %v642, 1
        %v644 = vadd.f32 %v642, %v643
        %645 = vst [vmem:[%s245] sm:$0x1] %v644
        %v646 = vmul.f32 %v481, %v481
        %v647 = vmul.f32 %v484, %v484
        %v648 = vmul.f32 %v487, %v487
        %v649 = vmul.f32 %v490, %v490
        %v650 = vmul.f32 %v493, %v493
        %v651 = vmul.f32 %v496, %v496
        %v652 = vmul.f32 %v499, %v499
        %v653 = vmul.f32 %v502, %v502
        %v654 = vmul.f32 %v505, %v505
        %v655 = vmul.f32 %v508, %v508
        %v656 = vmul.f32 %v511, %v511
        %v657 = vmul.f32 %v514, %v514
        %v658 = vmul.f32 %v517, %v517
        %v659 = vmul.f32 %v520, %v520
        %v660 = vmul.f32 %v523, %v523
        %v661 = vmul.f32 %v526, %v526
        %v662 = vmul.f32 %v529, %v529
        %v663 = vmul.f32 %v532, %v532
        %v664 = vmul.f32 %v535, %v535
        %v665 = vmul.f32 %v538, %v538
        %v666 = vmul.f32 %v541, %v541
        %v667 = vmul.f32 %v544, %v544
        %v668 = vmul.f32 %v547, %v547
        %v669 = vmul.f32 %v550, %v550
        %v670 = vmul.f32 %v553, %v553
        %v671 = vmul.f32 %v556, %v556
        %v672 = vmul.f32 %v559, %v559
        %v673 = vmul.f32 %v562, %v562
        %v674 = vmul.f32 %v565, %v565
        %v675 = vmul.f32 %v568, %v568
        %v676 = vmul.f32 %v571, %v571
        %v677 = vmul.f32 %v574, %v574
        %v678 = vadd.f32 %v646, %v647
        %v679 = vadd.f32 %v678, %v648
        %v680 = vadd.f32 %v679, %v649
        %v681 = vadd.f32 %v680, %v650
        %v682 = vadd.f32 %v681, %v651
        %v683 = vadd.f32 %v682, %v652
        %v684 = vadd.f32 %v683, %v653
        %v685 = vadd.f32 %v684, %v654
        %v686 = vadd.f32 %v685, %v655
        %v687 = vadd.f32 %v686, %v656
        %v688 = vadd.f32 %v687, %v657
        %v689 = vadd.f32 %v688, %v658
        %v690 = vadd.f32 %v689, %v659
        %v691 = vadd.f32 %v690, %v660
        %v692 = vadd.f32 %v691, %v661
        %v693 = vadd.f32 %v692, %v662
        %v694 = vadd.f32 %v693, %v663
        %v695 = vadd.f32 %v694, %v664
        %v696 = vadd.f32 %v695, %v665
        %v697 = vadd.f32 %v696, %v666
        %v698 = vadd.f32 %v697, %v667
        %v699 = vadd.f32 %v698, %v668
        %v700 = vadd.f32 %v699, %v669
        %v701 = vadd.f32 %v700, %v670
        %v702 = vadd.f32 %v701, %v671
        %v703 = vadd.f32 %v702, %v672
        %v704 = vadd.f32 %v703, %v673
        %v705 = vadd.f32 %v704, %v674
        %v706 = vadd.f32 %v705, %v675
        %v707 = vadd.f32 %v706, %v676
        %v708 = vadd.f32 %v707, %v677
        %v709 = vrot.slane %v708, 4
        %v710 = vadd.f32 %v708, %v709
        %v711 = vrot.slane %v710, 2
        %v712 = vadd.f32 %v710, %v711
        %v713 = vrot.slane %v712, 1
        %v714 = vadd.f32 %v712, %v713
        %715 = vst [vmem:[%s251] sm:$0x1] %v714
        %s716 = sand.u32 %s81, 1
        %s717 = scalar_lea.sflag [#allocation4], %s716
        %s718 = sand.u32 %s81, 1
        %s719 = smul.addr %s718, 256
        %s720 = scalar_lea.vmem [#allocation7], %s719
        %s721 = sand.u32 %s26, 1
        %s722 = scalar_lea.sflag [#allocation9], %s721
        %s723 = sand.u32 %s107, 1
        %s724 = scalar_lea.vmem [#allocation8], %s723
        %s725 = sand.u32 %s26, 1
        %s726 = scalar_lea.sflag [#allocation9], %s725
        %s727 = sand.u32 %s133, 1
        %s728 = scalar_lea.vmem [#allocation10], %s727
        // Predicated region
        $region37: #{tpu_custom_call.1} parent=27 // pred_check
          %p729 = pneg %p91
        $region38: #{tpu_custom_call.1} parent=27 // pred_check_branch
          %731 = sbr.rel (%p729) target = $region40
        $region39: #{tpu_custom_call.1} parent=27 // pred_region
          %s732 = smul.u32 32, %s26
          %734 = vsyncadd %s717, 0
          %s735 = smul.addr %s732, 8
          %s736 = scalar_lea.hbm %s2, %s735
          %s737 = sshll.u32 %s720, 4
          %s738 = int_to_ptr.vmem [resolvable:$true] %s737
          %s739 = sshll.u32 %s736, 4
          %s740 = int_to_ptr.hbm [resolvable:$true] %s739
          %745 = dma.vmem_to_hbm [thread:$0]  %s738, 4096, %s740, %s717, 128, 128, 8
        $region40: #{tpu_custom_call.1} parent=27 // pred_fallthru
          _
        // Predicated region
        $region41: #{tpu_custom_call.1} parent=27 // pred_check
          %p746 = pneg %p117
        $region42: #{tpu_custom_call.1} parent=27 // pred_check_branch
          %748 = sbr.rel (%p746) target = $region44
        $region43: #{tpu_custom_call.1} parent=27 // pred_region
          %750 = vsyncadd %s722, 0
          %s751 = scalar_lea.hbm %s3, %s26
          %s753 = sshll.u32 %s724, 4
          %s754 = int_to_ptr.vmem [resolvable:$true] %s753
          %s755 = sshll.u32 %s751, 4
          %s756 = int_to_ptr.hbm [resolvable:$true] %s755
          %758 = dma.vmem_to_hbm [thread:$0]  %s754, 16, %s756, %s722
        $region44: #{tpu_custom_call.1} parent=27 // pred_fallthru
          _
        // Predicated region
        $region45: #{tpu_custom_call.1} parent=27 // pred_check
          %p759 = pneg %p143
        $region46: #{tpu_custom_call.1} parent=27 // pred_check_branch
          %761 = sbr.rel (%p759) target = $region48
        $region47: #{tpu_custom_call.1} parent=27 // pred_region
          %763 = vsyncadd %s726, 0
          %s764 = scalar_lea.hbm %s4, %s26
          %s766 = sshll.u32 %s728, 4
          %s767 = int_to_ptr.vmem [resolvable:$true] %s766
          %s768 = sshll.u32 %s764, 4
          %s769 = int_to_ptr.hbm [resolvable:$true] %s768
          %771 = dma.vmem_to_hbm [thread:$0]  %s767, 16, %s769, %s726
        $region48: #{tpu_custom_call.1} parent=27 // pred_fallthru
          _
      $region28: #{tpu_custom_call.1} parent=5 // pred_fallthru
        _
      %p772 = scmp.le.s32.totalorder 2, %s21
      // Predicated region
      $region49: #{tpu_custom_call.1} parent=5 // pred_check
        %p773 = pneg %p772
      $region50: #{tpu_custom_call.1} parent=5 // pred_check_branch
        %775 = sbr.rel (%p773) target = $region52
      $region51: #{tpu_custom_call.1} parent=5 // pred_region
        %s776 = ssub.s32 %s21, 2
        // Predicated region
        $region53: #{tpu_custom_call.1} parent=51 // pred_check
          %p777 = pneg %p97
        $region54: #{tpu_custom_call.1} parent=51 // pred_check_branch
          %779 = sbr.rel (%p777) target = $region56
        $region55: #{tpu_custom_call.1} parent=51 // pred_region
          %s780 = sand.u32 %s82, 1
          %s781 = scalar_lea.sflag [#allocation4], %s780
          %s782 = sand.u32 %s82, 1
          %s783 = smul.addr %s782, 256
          %s784 = scalar_lea.vmem [#allocation7], %s783
          %786 = dma.done %s781, 4096
        $region56: #{tpu_custom_call.1} parent=51 // pred_fallthru
          _
        // Predicated region
        $region57: #{tpu_custom_call.1} parent=51 // pred_check
          %p787 = pneg %p123
        $region58: #{tpu_custom_call.1} parent=51 // pred_check_branch
          %789 = sbr.rel (%p787) target = $region60
        $region59: #{tpu_custom_call.1} parent=51 // pred_region
          %s790 = sand.u32 %s27, 1
          %s791 = scalar_lea.sflag [#allocation9], %s790
          %s792 = sand.u32 %s108, 1
          %s793 = scalar_lea.vmem [#allocation8], %s792
          %795 = dma.done %s791, 16
        $region60: #{tpu_custom_call.1} parent=51 // pred_fallthru
          _
        // Predicated region
        $region61: #{tpu_custom_call.1} parent=51 // pred_check
          %p796 = pneg %p149
        $region62: #{tpu_custom_call.1} parent=51 // pred_check_branch
          %798 = sbr.rel (%p796) target = $region64
        $region63: #{tpu_custom_call.1} parent=51 // pred_region
          %s799 = sand.u32 %s27, 1
          %s800 = scalar_lea.sflag [#allocation9], %s799
          %s801 = sand.u32 %s134, 1
          %s802 = scalar_lea.vmem [#allocation10], %s801
          %804 = dma.done %s800, 16
        $region64: #{tpu_custom_call.1} parent=51 // pred_fallthru
          _
      $region52: #{tpu_custom_call.1} parent=5 // pred_fallthru
        _
    $region6: #{tpu_custom_call.1} parent=1 // loop_footer
      %s25 = sadd.s32 1, %s21
    $region7: #{tpu_custom_call.1} parent=1 // loop_footer_branch
      %20 = sbr.rel target = $region3
    $region8: #{tpu_custom_call.1} parent=1 // loop_exit
      _
    %805 = vsyncpa [#allocation3], 1
    %s806 = scalar_lea.sflag [#allocation3], 1
    %807 = vsyncpa %s806, 1
    %808 = vsyncpa [#allocation6], 1
    %809 = vsyncpa [#allocation4], 1
    %s810 = scalar_lea.sflag [#allocation4], 1
    %811 = vsyncpa %s810, 1
    %812 = vsyncpa [#allocation9], 1
    %s813 = scalar_lea.sflag [#allocation9], 1
    %814 = vsyncpa %s813, 1

</llo_original>
